<compile_context>
chip_gen: v5e
topology: v5e:2x2
jax: 0.10.0
libtpu: 0.0.40
codegen_flags: <defaults>
</compile_context>

<pallas_src>
import functools

import jax
import jax.numpy as jnp
from jax.experimental import pallas as pl
from jax.experimental.pallas import tpu as pltpu

LANE = 128


def _softshrink(x, lambd):
    return jnp.where(x > lambd, x - lambd,
                     jnp.where(x < -lambd, x + lambd, jnp.zeros_like(x)))


def _block_diag(w):
    """(K, a, b) -> (K*a, K*b) block-diagonal matrix with w[k] on the diagonal."""
    K, a, b = w.shape
    eye = jnp.eye(K, dtype=w.dtype)
    t = w[:, None, :, :] * eye[:, :, None, None]      # (K, K, a, b)
    return t.transpose(0, 2, 1, 3).reshape(K * a, K * b)


def prepare_afno_weights(w1, b1, w2, b2):
    """Fuse the K per-block complex MLPs into dense real matrices, ONCE.

    Pure weight preprocessing, hoisted out of the per-forward path.  The two
    complex block-diagonal layers become single real matmuls acting on the
    stacked [real channels ; imag channels] vector:
        W = [[Wr, -Wi],
             [Wi,  Wr]]
    Returns (W1, B1, W2, B2): weights in bfloat16 (MXU operands), biases f32.
    """
    w1T = jnp.swapaxes(w1.astype(jnp.float32), -1, -2)           # (2, K, bsf, bs)
    w2T = jnp.swapaxes(w2.astype(jnp.float32), -1, -2)           # (2, K, bs, bsf)
    a_r, a_i = _block_diag(w1T[0]), _block_diag(w1T[1])          # (K*bsf, C)
    W1 = jnp.concatenate([jnp.concatenate([a_r, -a_i], axis=1),
                          jnp.concatenate([a_i,  a_r], axis=1)], axis=0)   # (2K*bsf, 2C)
    c_r, c_i = _block_diag(w2T[0]), _block_diag(w2T[1])          # (C, K*bsf)
    W2 = jnp.concatenate([jnp.concatenate([c_r, -c_i], axis=1),
                          jnp.concatenate([c_i,  c_r], axis=1)], axis=0)   # (2C, 2K*bsf)
    B1 = jnp.concatenate([b1[0].reshape(-1),
                          b1[1].reshape(-1)]).astype(jnp.float32)[:, None]  # (2K*bsf, 1)
    B2 = jnp.concatenate([b2[0].reshape(-1),
                          b2[1].reshape(-1)]).astype(jnp.float32)[:, None]  # (2C, 1)
    return W1.astype(jnp.bfloat16), B1, W2.astype(jnp.bfloat16), B2


def afno_kernel(z_ref, w1_ref, b1_ref, w2_ref, b2_ref, o_ref, *, lambd):
    z = z_ref[...]                                    # (2C, Lt)  bf16
    c = z.shape[0] // 2

    # Layer 1: fused complex block-diagonal matmul (bf16 operands, f32 acc) + ReLU.
    h = jnp.dot(w1_ref[...], z, preferred_element_type=jnp.float32) + b1_ref[...]
    h = jnp.maximum(h, 0.0)
    # Layer 2 + softshrink on real/imag parts (matches torch.view_as_complex path).
    s = jnp.dot(w2_ref[...], h.astype(w2_ref.dtype),
                preferred_element_type=jnp.float32) + b2_ref[...]
    s = _softshrink(s, lambd)

    zf = z.astype(jnp.float32)
    xr, xi = zf[:c], zf[c:]
    sr, si = s[:c], s[c:]
    # Complex multiply with the original FFT coefficients.  Store the real
    # half first so its vregs retire before the imaginary half is computed
    # (no jnp.concatenate, no extra (2C, Lt) VMEM temp, fewer live vregs).
    o_ref[:c, :] = sr * xr - si * xi
    o_ref[c:, :] = sr * xi + si * xr


def _choose_lane_tile(lanes128):
    """Lane tile: prefer 256-1024 lanes/step while keeping >=2 grid steps."""
    for t in (1024, 512, 256):
        if lanes128 >= 2 * t:
            return t
    if lanes128 >= 2 * LANE:                 # small problem: two ~equal chunks
        half = -(-lanes128 // 2)
        return -(-half // LANE) * LANE
    return lanes128                          # tiny: single 128-lane step


def afno2d_channelfirst(x, fused_weights, *, sparsity_threshold=0.01):
    W1, B1, W2, B2 = fused_weights
    bias = x
    dtype = x.dtype
    xf = x.astype(jnp.float32)
    B, C, H, W = xf.shape

    # TODO(synk): FFT has no Pallas primitive on TPU; rfft2/irfft2 stay in JAX.
    xft = jnp.fft.rfft2(xf, axes=(2, 3), norm='ortho')           # [B, C, H, Wf] complex
    Wf = xft.shape[-1]
    HW = H * Wf
    L = B * HW                                                   # batch merged into lanes

    # Stacked real layout: [2C, B*HW] = [real channels ; imag channels].
    z = jnp.concatenate([jnp.real(xft), jnp.imag(xft)], axis=1)  # [B, 2C, H, Wf]
    z = z.reshape(B, 2 * C, HW).transpose(1, 0, 2).reshape(2 * C, L)

    lanes128 = pl.cdiv(L, LANE) * LANE
    tile_l = _choose_lane_tile(lanes128)
    Lpad = pl.cdiv(L, tile_l) * tile_l
    if Lpad != L:
        z = jnp.pad(z, ((0, 0), (0, Lpad - L)))
    z = z.astype(jnp.bfloat16)                                   # halve activation DMA

    C2 = 2 * C
    H1 = W1.shape[0]
    n_l = Lpad // tile_l

    kernel = functools.partial(afno_kernel, lambd=sparsity_threshold)

    data_spec = pl.BlockSpec((C2, tile_l), lambda l: (0, l))
    # Constant-index weights/biases: single-buffered, stay resident in VMEM.
    def const_spec(shape):
        return pl.BlockSpec(shape, lambda l: (0, 0),
                            pipeline_mode=pl.Buffered(1))

    out = pl.pallas_call(
        kernel,
        out_shape=jax.ShapeDtypeStruct((C2, Lpad), jnp.float32),
        grid=(n_l,),
        in_specs=[data_spec,
                  const_spec((H1, C2)), const_spec((H1, 1)),
                  const_spec((C2, H1)), const_spec((C2, 1))],
        out_specs=pl.BlockSpec((C2, tile_l), lambda l: (0, l)),
        compiler_params=pltpu.CompilerParams(
            dimension_semantics=("parallel",),
            vmem_limit_bytes=64 * 1024 * 1024),
    )(z, W1, B1, W2, B2)

    out = out[:, :L].reshape(C2, B, HW).transpose(1, 0, 2)       # [B, 2C, HW]
    out_c = (out[:, :C] + 1j * out[:, C:]).reshape(B, C, H, Wf)
    y = jnp.fft.irfft2(out_c, s=(H, W), axes=(2, 3), norm='ortho')
    return y.astype(dtype) + bias


def afno2d_reference(x, w1, b1, w2, b2, *, num_blocks=8, lambd=0.01):
    """Pure-JAX f32 reference mirroring the PyTorch forward, for validation."""
    bias = x
    dtype = x.dtype
    xf = x.astype(jnp.float32)
    B, C, H, W = xf.shape
    K = num_blocks
    bs = C // K
    xft = jnp.fft.rfft2(xf, axes=(2, 3), norm='ortho')
    origin = xft
    xb = xft.reshape(B, K, bs, H, xft.shape[-1])
    xr, xi = jnp.real(xb), jnp.imag(xb)
    o1r = jax.nn.relu(jnp.einsum('bkihw,kio->bkohw', xr, w1[0]) -
                      jnp.einsum('bkihw,kio->bkohw', xi, w1[1]) +
                      b1[0][None, :, :, None, None])
    o1i = jax.nn.relu(jnp.einsum('bkihw,kio->bkohw', xi, w1[0]) +
                      jnp.einsum('bkihw,kio->bkohw', xr, w1[1]) +
                      b1[1][None, :, :, None, None])
    o2r = (jnp.einsum('bkihw,kio->bkohw', o1r, w2[0]) -
           jnp.einsum('bkihw,kio->bkohw', o1i, w2[1]) +
           b2[0][None, :, :, None, None])
    o2i = (jnp.einsum('bkihw,kio->bkohw', o1i, w2[0]) +
           jnp.einsum('bkihw,kio->bkohw', o1r, w2[1]) +
           b2[1][None, :, :, None, None])
    sr = _softshrink(o2r, lambd)
    si = _softshrink(o2i, lambd)
    s = (sr + 1j * si).reshape(B, C, H, xft.shape[-1])
    y = jnp.fft.irfft2(s * origin, s=(H, W), axes=(2, 3), norm='ortho')
    return y.astype(dtype) + bias


if __name__ == "__main__":
    # Module hyper-params: hidden_size=32, num_blocks=8 -> block_size=4,
    # hidden_size_factor=1, sparsity_threshold=0.01.
    B, C, H, W = 2, 32, 16, 16
    K, bs, bsf = 8, 4, 4
    scale = 0.02

    key = jax.random.PRNGKey(0)
    kx, k1, k2, k3, k4 = jax.random.split(key, 5)
    x = jax.random.normal(kx, (B, C, H, W), dtype=jnp.float32)
    w1 = scale * jax.random.normal(k1, (2, K, bs, bsf), dtype=jnp.float32)
    b1 = scale * jax.random.normal(k2, (2, K, bsf), dtype=jnp.float32)
    w2 = scale * jax.random.normal(k3, (2, K, bsf, bs), dtype=jnp.float32)
    b2 = scale * jax.random.normal(k4, (2, K, bs), dtype=jnp.float32)

    # Weight fusion done ONCE at parameter-load time (not per forward).
    fused = prepare_afno_weights(w1, b1, w2, b2)
    fwd = jax.jit(functools.partial(afno2d_channelfirst, sparsity_threshold=0.01))

    out = jax.block_until_ready(fwd(x, fused))
    ref = jax.block_until_ready(
        afno2d_reference(x, w1, b1, w2, b2, num_blocks=K, lambd=0.01))

    assert out.shape == (B, C, H, W) and out.dtype == x.dtype
    err = jnp.max(jnp.abs(out - ref))
    # bf16 matmul operands (f32 accumulation) => looser tolerance than pure f32.
    assert jnp.allclose(out, ref, atol=2e-2, rtol=2e-2), f"max abs diff {err}"

    print("KERNEL_OK")
</pallas_src>

<mosaic_0001>
module attributes {stable_mosaic.version = 11 : i64} {
  func.func @afno_kernel(%arg0: i32, %arg1: memref<64x256xbf16, #tpu.memory_space<vmem>>, %arg2: memref<64x64xbf16, #tpu.memory_space<vmem>>, %arg3: memref<64x1xf32, #tpu.memory_space<vmem>>, %arg4: memref<64x64xbf16, #tpu.memory_space<vmem>>, %arg5: memref<64x1xf32, #tpu.memory_space<vmem>>, %arg6: memref<64x256xf32, #tpu.memory_space<vmem>>) attributes {dimension_semantics = [#tpu.dimension_semantics<parallel>], iteration_bounds = array<i64: 2>, scalar_prefetch = 0 : i64, scratch_operands = 0 : i64, tpu.core_type = #tpu.core_type<tc>, window_params = [{transform_indices = @transform_0, window_bounds = array<i64: 64, 256>}, {pipeline_mode = #tpu.pipeline_mode<synchronous>, transform_indices = @transform_1, window_bounds = array<i64: 64, 64>}, {pipeline_mode = #tpu.pipeline_mode<synchronous>, transform_indices = @transform_2, window_bounds = array<i64: 64, 1>}, {pipeline_mode = #tpu.pipeline_mode<synchronous>, transform_indices = @transform_3, window_bounds = array<i64: 64, 64>}, {pipeline_mode = #tpu.pipeline_mode<synchronous>, transform_indices = @transform_4, window_bounds = array<i64: 64, 1>}, {transform_indices = @transform_5, window_bounds = array<i64: 64, 256>}]} {
    %c0 = arith.constant 0 : index
    %c0_0 = arith.constant 0 : index
    %0 = vector.load %arg1[%c0, %c0_0] : memref<64x256xbf16, #tpu.memory_space<vmem>>, vector<64x256xbf16>
    %c0_1 = arith.constant 0 : index
    %c0_2 = arith.constant 0 : index
    %1 = vector.load %arg2[%c0_1, %c0_2] : memref<64x64xbf16, #tpu.memory_space<vmem>>, vector<64x64xbf16>
    %cst = arith.constant dense<0.000000e+00> : vector<64x256xf32>
    %2 = tpu.matmul %1, %0, %cst {dimension_numbers = #tpu.dot_dimension_numbers<[1], [0], [0], [1], [0, 0, 1, 1], [], []>} : vector<64x64xbf16>, vector<64x256xbf16>, vector<64x256xf32> -> vector<64x256xf32>
    %c0_3 = arith.constant 0 : index
    %c0_4 = arith.constant 0 : index
    %3 = vector.load %arg3[%c0_3, %c0_4] : memref<64x1xf32, #tpu.memory_space<vmem>>, vector<64x1xf32>
    %4 = vector.broadcast %3 : vector<64x1xf32> to vector<64x256xf32>
    %5 = arith.addf %2, %4 : vector<64x256xf32>
    %cst_5 = arith.constant 0.000000e+00 : f32
    %6 = vector.broadcast %cst_5 : f32 to vector<64x256xf32>
    %7 = arith.maximumf %5, %6 : vector<64x256xf32>
    %c0_6 = arith.constant 0 : index
    %c0_7 = arith.constant 0 : index
    %8 = vector.load %arg4[%c0_6, %c0_7] : memref<64x64xbf16, #tpu.memory_space<vmem>>, vector<64x64xbf16>
    %9 = arith.truncf %7 : vector<64x256xf32> to vector<64x256xbf16>
    %cst_8 = arith.constant dense<0.000000e+00> : vector<64x256xf32>
    %10 = tpu.matmul %8, %9, %cst_8 {dimension_numbers = #tpu.dot_dimension_numbers<[1], [0], [0], [1], [0, 0, 1, 1], [], []>} : vector<64x64xbf16>, vector<64x256xbf16>, vector<64x256xf32> -> vector<64x256xf32>
    %c0_9 = arith.constant 0 : index
    %c0_10 = arith.constant 0 : index
    %11 = vector.load %arg5[%c0_9, %c0_10] : memref<64x1xf32, #tpu.memory_space<vmem>>, vector<64x1xf32>
    %12 = vector.broadcast %11 : vector<64x1xf32> to vector<64x256xf32>
    %13 = arith.addf %10, %12 : vector<64x256xf32>
    %cst_11 = arith.constant 0.00999999977 : f32
    %14 = vector.broadcast %cst_11 : f32 to vector<64x256xf32>
    %15 = arith.cmpf ogt, %13, %14 : vector<64x256xf32>
    %cst_12 = arith.constant 0.00999999977 : f32
    %16 = vector.broadcast %cst_12 : f32 to vector<64x256xf32>
    %17 = arith.subf %13, %16 : vector<64x256xf32>
    %cst_13 = arith.constant -0.00999999977 : f32
    %18 = vector.broadcast %cst_13 : f32 to vector<64x256xf32>
    %19 = arith.cmpf olt, %13, %18 : vector<64x256xf32>
    %cst_14 = arith.constant 0.00999999977 : f32
    %20 = vector.broadcast %cst_14 : f32 to vector<64x256xf32>
    %21 = arith.addf %13, %20 : vector<64x256xf32>
    %cst_15 = arith.constant 0.000000e+00 : f32
    %22 = vector.broadcast %cst_15 : f32 to vector<64x256xf32>
    %23 = arith.select %19, %21, %22 : vector<64x256xi1>, vector<64x256xf32>
    %24 = arith.select %15, %17, %23 : vector<64x256xi1>, vector<64x256xf32>
    %25 = arith.extf %0 : vector<64x256xbf16> to vector<64x256xf32>
    %26 = vector.extract_strided_slice %25 {offsets = [0, 0], sizes = [32, 256], strides = [1, 1]} : vector<64x256xf32> to vector<32x256xf32>
    %27 = vector.extract_strided_slice %25 {offsets = [32, 0], sizes = [32, 256], strides = [1, 1]} : vector<64x256xf32> to vector<32x256xf32>
    %28 = vector.extract_strided_slice %24 {offsets = [0, 0], sizes = [32, 256], strides = [1, 1]} : vector<64x256xf32> to vector<32x256xf32>
    %29 = vector.extract_strided_slice %24 {offsets = [32, 0], sizes = [32, 256], strides = [1, 1]} : vector<64x256xf32> to vector<32x256xf32>
    %30 = arith.mulf %28, %26 : vector<32x256xf32>
    %31 = arith.mulf %29, %27 : vector<32x256xf32>
    %32 = arith.subf %30, %31 : vector<32x256xf32>
    %c0_16 = arith.constant 0 : index
    %c0_17 = arith.constant 0 : index
    %33 = vector.load %arg6[%c0_16, %c0_17] : memref<64x256xf32, #tpu.memory_space<vmem>>, vector<32x256xf32>
    tpu.vector_store %arg6[%c0_16, %c0_17], %32 {strides = array<i32>} : memref<64x256xf32, #tpu.memory_space<vmem>>, vector<32x256xf32>,
    %34 = arith.mulf %28, %27 : vector<32x256xf32>
    %35 = arith.mulf %29, %26 : vector<32x256xf32>
    %36 = arith.addf %34, %35 : vector<32x256xf32>
    %c32 = arith.constant 32 : index
    %c0_18 = arith.constant 0 : index
    %37 = vector.load %arg6[%c32, %c0_18] : memref<64x256xf32, #tpu.memory_space<vmem>>, vector<32x256xf32>
    tpu.vector_store %arg6[%c32, %c0_18], %36 {strides = array<i32>} : memref<64x256xf32, #tpu.memory_space<vmem>>, vector<32x256xf32>,
    return
  }
  func.func @transform_0(%arg0: i32) -> (i32, i32) {
    %c0_i32 = arith.constant 0 : i32
    %c0_i32_0 = arith.constant 0 : i32
    return %c0_i32, %arg0 : i32, i32
  }
  func.func @transform_1(%arg0: i32) -> (i32, i32) {
    %c0_i32 = arith.constant 0 : i32
    %c0_i32_0 = arith.constant 0 : i32
    %c0_i32_1 = arith.constant 0 : i32
    return %c0_i32, %c0_i32_0 : i32, i32
  }
  func.func @transform_2(%arg0: i32) -> (i32, i32) {
    %c0_i32 = arith.constant 0 : i32
    %c0_i32_0 = arith.constant 0 : i32
    %c0_i32_1 = arith.constant 0 : i32
    return %c0_i32, %c0_i32_0 : i32, i32
  }
  func.func @transform_3(%arg0: i32) -> (i32, i32) {
    %c0_i32 = arith.constant 0 : i32
    %c0_i32_0 = arith.constant 0 : i32
    %c0_i32_1 = arith.constant 0 : i32
    return %c0_i32, %c0_i32_0 : i32, i32
  }
  func.func @transform_4(%arg0: i32) -> (i32, i32) {
    %c0_i32 = arith.constant 0 : i32
    %c0_i32_0 = arith.constant 0 : i32
    %c0_i32_1 = arith.constant 0 : i32
    return %c0_i32, %c0_i32_0 : i32, i32
  }
  func.func @transform_5(%arg0: i32) -> (i32, i32) {
    %c0_i32 = arith.constant 0 : i32
    %c0_i32_0 = arith.constant 0 : i32
    return %c0_i32, %arg0 : i32, i32
  }
}

</mosaic_0001>

<llo_original>
// kernel: afno2d_channelfirst.1
$region0: #{afno2d_channelfirst.1}
  #allocation0 [shape = 'u32[]', space=smem, size = 0x4, offset = 0x4, fixed_abs, tag = 'smem constant byte address 0x4 - core index']
  #allocation1 [shape = 'u32[72,128]{1,0:T(1,128)}', space=vmem, size = 0x9000, scoped, tag = 'internal scratch']
  %s0 = inlined_call_operand.vmem [shape: bf16[64,512], index: 0, kind: input, shape index: {}]
  %s1 = inlined_call_operand.vmem [shape: bf16[64,64], index: 1, kind: input, shape index: {}]
  %s2 = inlined_call_operand.vmem [shape: f32[64,1], index: 2, kind: input, shape index: {}]
  %s3 = inlined_call_operand.vmem [shape: bf16[64,64], index: 3, kind: input, shape index: {}]
  %s4 = inlined_call_operand.vmem [shape: f32[64,1], index: 4, kind: input, shape index: {}]
  %s5 = inlined_call_operand.vmem [shape: f32[64,512], index: 5, kind: output, shape index: {}]
  %s6 = sld [smem:[#allocation0]]
  $region110: #{afno2d_channelfirst.1} parent=0
    _
  %s8 = ssub.s32 1, %s6
  %s9 = scalar_select 0, %s8, %s6
  $region1: #{afno2d_channelfirst.1} parent=0
    #allocation2 [shape = 'u8[65536]{0}', space=vmem, size = 0x10000, scoped, tag = 'input window, operand 0']
    #allocation3 [shape = 'u8[131072]{0}', space=vmem, size = 0x20000, scoped, tag = 'output window, operand 0']
    loop: start=0, step=1, limit=4
    $region2: #{afno2d_channelfirst.1} parent=1 // loop_pre_header
      _
    $region3: #{afno2d_channelfirst.1} parent=1 // loop_header
      %s11 = sphi 0, %s15
      %p12 = scmp.ge.s32.totalorder %s11, 4
      %s21 = sphi 0, %s23
      %s24 = sphi 0, %s21
      %s25 = sphi 0, %s24
      %s41 = sphi 0, %s25
      %s45 = sphi 0, %s45
      %s47 = sphi 0, %s45
      %s48 = sphi 0, %s47
      %s62 = sphi 0, %s48
      %s66 = sphi 0, %s66
      %s68 = sphi 0, %s66
      %s69 = sphi 0, %s68
      %s83 = sphi 0, %s69
      %s87 = sphi 0, %s87
      %s89 = sphi 0, %s87
      %s90 = sphi 0, %s89
      %s104 = sphi 0, %s90
      %s108 = sphi 0, %s108
      %s110 = sphi 0, %s108
      %s111 = sphi 0, %s110
      %s125 = sphi 0, %s111
      %s131 = sphi 0, %s133
      %s134 = sphi 0, %s131
      %s135 = sphi 0, %s134
      %s151 = sphi 0, %s135
    $region4: #{afno2d_channelfirst.1} parent=1 // loop_header_branch
      %14 = sbr.rel (%p12) target = $region8
    $region5: #{afno2d_channelfirst.1} parent=1 // loop_body
      %s16 = ssub.s32 %s11, 1
      %s17 = ssub.s32 %s11, 2
      %s18 = sadd.s32 %s11, 1
      %s19 = ssub.s32 %s11, %s18
      %p20 = scmp.eq.s32.totalorder %s19, 0
      %s22 = sadd.s32 %s21, 1
      %s23 = scalar_select %p20, %s21, %s22
      %p26 = pneg %p20
      %p27 = scmp.eq.s32.totalorder %s11, 1
      %p28 = por %p26, %p27
      %p29 = scmp.ne.s32.totalorder %s21, %s24
      %p30 = scmp.eq.s32.totalorder %s11, 0
      %p31 = por %p29, %p30
      %p32 = scmp.ne.s32.totalorder %s21, %s24
      %p33 = scmp.eq.s32.totalorder %s16, 1
      %p34 = por %p32, %p33
      %p35 = scmp.ne.s32.totalorder %s24, %s25
      %p36 = scmp.eq.s32.totalorder %s16, 0
      %p37 = por %p35, %p36
      %p38 = scmp.ne.s32.totalorder %s24, %s25
      %p39 = scmp.eq.s32.totalorder %s17, 1
      %p40 = por %p38, %p39
      %p42 = scmp.ne.s32.totalorder %s25, %s41
      %p43 = scmp.eq.s32.totalorder %s17, 0
      %p44 = por %p42, %p43
      %s46 = sadd.s32 %s45, 1
      %p49 = scmp.eq.s32.totalorder %s11, 1
      %p50 = scmp.ne.s32.totalorder %s45, %s47
      %p51 = scmp.eq.s32.totalorder %s11, 0
      %p52 = por %p50, %p51
      %p53 = scmp.ne.s32.totalorder %s45, %s47
      %p54 = scmp.eq.s32.totalorder %s16, 1
      %p55 = por %p53, %p54
      %p56 = scmp.ne.s32.totalorder %s47, %s48
      %p57 = scmp.eq.s32.totalorder %s16, 0
      %p58 = por %p56, %p57
      %p59 = scmp.ne.s32.totalorder %s47, %s48
      %p60 = scmp.eq.s32.totalorder %s17, 1
      %p61 = por %p59, %p60
      %p63 = scmp.ne.s32.totalorder %s48, %s62
      %p64 = scmp.eq.s32.totalorder %s17, 0
      %p65 = por %p63, %p64
      %s67 = sadd.s32 %s66, 1
      %p70 = scmp.eq.s32.totalorder %s11, 1
      %p71 = scmp.ne.s32.totalorder %s66, %s68
      %p72 = scmp.eq.s32.totalorder %s11, 0
      %p73 = por %p71, %p72
      %p74 = scmp.ne.s32.totalorder %s66, %s68
      %p75 = scmp.eq.s32.totalorder %s16, 1
      %p76 = por %p74, %p75
      %p77 = scmp.ne.s32.totalorder %s68, %s69
      %p78 = scmp.eq.s32.totalorder %s16, 0
      %p79 = por %p77, %p78
      %p80 = scmp.ne.s32.totalorder %s68, %s69
      %p81 = scmp.eq.s32.totalorder %s17, 1
      %p82 = por %p80, %p81
      %p84 = scmp.ne.s32.totalorder %s69, %s83
      %p85 = scmp.eq.s32.totalorder %s17, 0
      %p86 = por %p84, %p85
      %s88 = sadd.s32 %s87, 1
      %p91 = scmp.eq.s32.totalorder %s11, 1
      %p92 = scmp.ne.s32.totalorder %s87, %s89
      %p93 = scmp.eq.s32.totalorder %s11, 0
      %p94 = por %p92, %p93
      %p95 = scmp.ne.s32.totalorder %s87, %s89
      %p96 = scmp.eq.s32.totalorder %s16, 1
      %p97 = por %p95, %p96
      %p98 = scmp.ne.s32.totalorder %s89, %s90
      %p99 = scmp.eq.s32.totalorder %s16, 0
      %p100 = por %p98, %p99
      %p101 = scmp.ne.s32.totalorder %s89, %s90
      %p102 = scmp.eq.s32.totalorder %s17, 1
      %p103 = por %p101, %p102
      %p105 = scmp.ne.s32.totalorder %s90, %s104
      %p106 = scmp.eq.s32.totalorder %s17, 0
      %p107 = por %p105, %p106
      %s109 = sadd.s32 %s108, 1
      %p112 = scmp.eq.s32.totalorder %s11, 1
      %p113 = scmp.ne.s32.totalorder %s108, %s110
      %p114 = scmp.eq.s32.totalorder %s11, 0
      %p115 = por %p113, %p114
      %p116 = scmp.ne.s32.totalorder %s108, %s110
      %p117 = scmp.eq.s32.totalorder %s16, 1
      %p118 = por %p116, %p117
      %p119 = scmp.ne.s32.totalorder %s110, %s111
      %p120 = scmp.eq.s32.totalorder %s16, 0
      %p121 = por %p119, %p120
      %p122 = scmp.ne.s32.totalorder %s110, %s111
      %p123 = scmp.eq.s32.totalorder %s17, 1
      %p124 = por %p122, %p123
      %p126 = scmp.ne.s32.totalorder %s111, %s125
      %p127 = scmp.eq.s32.totalorder %s17, 0
      %p128 = por %p126, %p127
      %s129 = ssub.s32 %s11, %s18
      %p130 = scmp.eq.s32.totalorder %s129, 0
      %s132 = sadd.s32 %s131, 1
      %s133 = scalar_select %p130, %s131, %s132
      %p136 = pneg %p130
      %p137 = scmp.eq.s32.totalorder %s11, 1
      %p138 = por %p136, %p137
      %p139 = scmp.ne.s32.totalorder %s131, %s134
      %p140 = scmp.eq.s32.totalorder %s11, 0
      %p141 = por %p139, %p140
      %p142 = scmp.ne.s32.totalorder %s131, %s134
      %p143 = scmp.eq.s32.totalorder %s16, 1
      %p144 = por %p142, %p143
      %p145 = scmp.ne.s32.totalorder %s134, %s135
      %p146 = scmp.eq.s32.totalorder %s16, 0
      %p147 = por %p145, %p146
      %p148 = scmp.ne.s32.totalorder %s134, %s135
      %p149 = scmp.eq.s32.totalorder %s17, 1
      %p150 = por %p148, %p149
      %p152 = scmp.ne.s32.totalorder %s135, %s151
      %p153 = scmp.eq.s32.totalorder %s17, 0
      %p154 = por %p152, %p153
      %p155 = scmp.le.s32.totalorder 1, %s11
      %p156 = scmp.lt.s32.totalorder %s11, 3
      %p157 = pnand %p155, %p156
      %p158 = pneg %p157
      // Predicated region
      $region9: #{afno2d_channelfirst.1} parent=5 // pred_check
        _
      $region10: #{afno2d_channelfirst.1} parent=5 // pred_check_branch
        %160 = sbr.rel (%p157) target = $region12
      $region11: #{afno2d_channelfirst.1} parent=5 // pred_region
        %s161 = ssub.s32 %s11, 1
        // Predicated region
        $region13: #{afno2d_channelfirst.1} parent=11 // pred_check
          %p162 = pneg %p58
        $region14: #{afno2d_channelfirst.1} parent=11 // pred_check_branch
          %164 = sbr.rel (%p162) target = $region16
        $region15: #{afno2d_channelfirst.1} parent=11 // pred_region
          _
        $region16: #{afno2d_channelfirst.1} parent=11 // pred_fallthru
          _
        // Predicated region
        $region17: #{afno2d_channelfirst.1} parent=11 // pred_check
          %p165 = pneg %p79
        $region18: #{afno2d_channelfirst.1} parent=11 // pred_check_branch
          %167 = sbr.rel (%p165) target = $region20
        $region19: #{afno2d_channelfirst.1} parent=11 // pred_region
          _
        $region20: #{afno2d_channelfirst.1} parent=11 // pred_fallthru
          _
        // Predicated region
        $region21: #{afno2d_channelfirst.1} parent=11 // pred_check
          %p168 = pneg %p100
        $region22: #{afno2d_channelfirst.1} parent=11 // pred_check_branch
          %170 = sbr.rel (%p168) target = $region24
        $region23: #{afno2d_channelfirst.1} parent=11 // pred_region
          _
        $region24: #{afno2d_channelfirst.1} parent=11 // pred_fallthru
          _
        // Predicated region
        $region25: #{afno2d_channelfirst.1} parent=11 // pred_check
          %p171 = pneg %p121
        $region26: #{afno2d_channelfirst.1} parent=11 // pred_check_branch
          %173 = sbr.rel (%p171) target = $region28
        $region27: #{afno2d_channelfirst.1} parent=11 // pred_region
          _
        $region28: #{afno2d_channelfirst.1} parent=11 // pred_fallthru
          _
      $region12: #{afno2d_channelfirst.1} parent=5 // pred_fallthru
        _
      %p174 = scmp.lt.s32.totalorder %s11, 2
      // Predicated region
      $region29: #{afno2d_channelfirst.1} parent=5 // pred_check
        %p175 = pneg %p174
      $region30: #{afno2d_channelfirst.1} parent=5 // pred_check_branch
        %177 = sbr.rel (%p175) target = $region32
      $region31: #{afno2d_channelfirst.1} parent=5 // pred_region
        // Predicated region
        $region33: #{afno2d_channelfirst.1} parent=31 // pred_check
          %p178 = pneg %p31
        $region34: #{afno2d_channelfirst.1} parent=31 // pred_check_branch
          %180 = sbr.rel (%p178) target = $region36
        $region35: #{afno2d_channelfirst.1} parent=31 // pred_region
          %s181 = sand.u32 %s21, 1
          %s182 = sand.u32 %s21, 1
          %s183 = smul.addr %s182, 64
          %s184 = scalar_lea.vmem [#allocation2], %s183
          %s185 = smul.u32 2, %s11
          %s186 = smul.addr %s185, 4
          %s187 = scalar_lea.vmem %s0, %s186
          // Predicated region
          $region37: #{afno2d_channelfirst.1} parent=35 // pred_check
            _
          $region38: #{afno2d_channelfirst.1} parent=35 // pred_check_branch
            %189 = sbr.rel (0) target = $region40
          $region39: #{afno2d_channelfirst.1} parent=35 // pred_region
            // Predicated region
            $region41: #{afno2d_channelfirst.1} parent=39 // pred_check
              _
            $region42: #{afno2d_channelfirst.1} parent=39 // pred_check_branch
              %191 = sbr.rel (0) target = $region44
            $region43: #{afno2d_channelfirst.1} parent=39 // pred_region
              // Predicated region
              $region56: #{afno2d_channelfirst.1} parent=43 // pred_check
                _
              $region57: #{afno2d_channelfirst.1} parent=43 // pred_check_branch
                %221 = sbr.rel (0) target = $region59
              $region58: #{afno2d_channelfirst.1} parent=43 // pred_region
                loop: start=0, step=1, limit=1
                $region60: #{afno2d_channelfirst.1} parent=58 // loop_pre_header
                  _
                $region61: #{afno2d_channelfirst.1} parent=58 // loop_header
                  %s223 = sphi 0, %s227
                  %p224 = scmp.ge.s32.totalorder %s223, 1
                  %s228 = sphi %s187, %s187
                  %s229 = sphi %s184, %s184
                $region62: #{afno2d_channelfirst.1} parent=58 // loop_header_branch
                  %226 = sbr.rel (%p224) target = $region66
                $region63: #{afno2d_channelfirst.1} parent=58 // loop_body
                  %v230 = vld [vmem:[%s228] sm:$0xff]
                  %231 = vst [vmem:[%s229] sm:$0xff] %v230
                  %v232 = vld [vmem:[%s228 + $0x10] sm:$0xff]
                  %233 = vst [vmem:[%s229 + $0x8] sm:$0xff] %v232
                  %v234 = vld [vmem:[%s228 + $0x20] sm:$0xff]
                  %235 = vst [vmem:[%s229 + $0x10] sm:$0xff] %v234
                  %v236 = vld [vmem:[%s228 + $0x30] sm:$0xff]
                  %237 = vst [vmem:[%s229 + $0x18] sm:$0xff] %v236
                  %v238 = vld [vmem:[%s228 + $0x40] sm:$0xff]
                  %239 = vst [vmem:[%s229 + $0x20] sm:$0xff] %v238
                  %v240 = vld [vmem:[%s228 + $0x50] sm:$0xff]
                  %241 = vst [vmem:[%s229 + $0x28] sm:$0xff] %v240
                  %v242 = vld [vmem:[%s228 + $0x60] sm:$0xff]
                  %243 = vst [vmem:[%s229 + $0x30] sm:$0xff] %v242
                  %v244 = vld [vmem:[%s228 + $0x70] sm:$0xff]
                  %245 = vst [vmem:[%s229 + $0x38] sm:$0xff] %v244
                $region64: #{afno2d_channelfirst.1} parent=58 // loop_footer
                  %s227 = sadd.s32 1, %s223
                $region65: #{afno2d_channelfirst.1} parent=58 // loop_footer_branch
                  %222 = sbr.rel target = $region61
                $region66: #{afno2d_channelfirst.1} parent=58 // loop_exit
                  _
              $region59: #{afno2d_channelfirst.1} parent=43 // pred_fallthru
                _
              // Predicated region
              $region67: #{afno2d_channelfirst.1} parent=43 // pred_check
                _
              $region68: #{afno2d_channelfirst.1} parent=43 // pred_check_branch
                %247 = sbr.rel target = $region70
              $region69: #{afno2d_channelfirst.1} parent=43 // pred_region
                _
              $region70: #{afno2d_channelfirst.1} parent=43 // pred_fallthru
                _
            $region44: #{afno2d_channelfirst.1} parent=39 // pred_fallthru
              _
            // Predicated region
            $region45: #{afno2d_channelfirst.1} parent=39 // pred_check
              _
            $region46: #{afno2d_channelfirst.1} parent=39 // pred_check_branch
              %193 = sbr.rel target = $region48
            $region47: #{afno2d_channelfirst.1} parent=39 // pred_region
              %s195 = ssub.s32 256, 1
              loop: start=0, step=1, limit=1
              $region49: #{afno2d_channelfirst.1} parent=47 // loop_pre_header
                _
              $region50: #{afno2d_channelfirst.1} parent=47 // loop_header
                %s197 = sphi 0, %s201
                %p198 = scmp.ge.s32.totalorder %s197, 1
                %s202 = sphi %s187, %s187
                %s203 = sphi %s184, %s184
              $region51: #{afno2d_channelfirst.1} parent=47 // loop_header_branch
                %200 = sbr.rel (%p198) target = $region55
              $region52: #{afno2d_channelfirst.1} parent=47 // loop_body
                %v204 = vld [vmem:[%s202] sm:%s195]
                %205 = vst [vmem:[%s203] sm:%s195] %v204
                %v206 = vld [vmem:[%s202 + $0x10] sm:%s195]
                %207 = vst [vmem:[%s203 + $0x8] sm:%s195] %v206
                %v208 = vld [vmem:[%s202 + $0x20] sm:%s195]
                %209 = vst [vmem:[%s203 + $0x10] sm:%s195] %v208
                %v210 = vld [vmem:[%s202 + $0x30] sm:%s195]
                %211 = vst [vmem:[%s203 + $0x18] sm:%s195] %v210
                %v212 = vld [vmem:[%s202 + $0x40] sm:%s195]
                %213 = vst [vmem:[%s203 + $0x20] sm:%s195] %v212
                %v214 = vld [vmem:[%s202 + $0x50] sm:%s195]
                %215 = vst [vmem:[%s203 + $0x28] sm:%s195] %v214
                %v216 = vld [vmem:[%s202 + $0x60] sm:%s195]
                %217 = vst [vmem:[%s203 + $0x30] sm:%s195] %v216
                %v218 = vld [vmem:[%s202 + $0x70] sm:%s195]
                %219 = vst [vmem:[%s203 + $0x38] sm:%s195] %v218
              $region53: #{afno2d_channelfirst.1} parent=47 // loop_footer
                %s201 = sadd.s32 1, %s197
              $region54: #{afno2d_channelfirst.1} parent=47 // loop_footer_branch
                %196 = sbr.rel target = $region50
              $region55: #{afno2d_channelfirst.1} parent=47 // loop_exit
                _
            $region48: #{afno2d_channelfirst.1} parent=39 // pred_fallthru
              _
          $region40: #{afno2d_channelfirst.1} parent=35 // pred_fallthru
            _
          %248 = vnop
        $region36: #{afno2d_channelfirst.1} parent=31 // pred_fallthru
          _
      $region32: #{afno2d_channelfirst.1} parent=5 // pred_fallthru
        _
      %p249 = scmp.le.s32.totalorder 1, %s11
      %p250 = scmp.lt.s32.totalorder %s11, 3
      %p251 = pnand %p249, %p250
      %p252 = pneg %p251
      // Predicated region
      $region71: #{afno2d_channelfirst.1} parent=5 // pred_check
        _
      $region72: #{afno2d_channelfirst.1} parent=5 // pred_check_branch
        %254 = sbr.rel (%p251) target = $region74
      $region73: #{afno2d_channelfirst.1} parent=5 // pred_region
        %s255 = ssub.s32 %s11, 1
        %s256 = sand.u32 %s24, 1
        %s257 = sand.u32 %s24, 1
        %s258 = smul.addr %s257, 64
        %s259 = scalar_lea.vmem [#allocation2], %s258
        // Predicated region
        $region75: #{afno2d_channelfirst.1} parent=73 // pred_check
          %p260 = pneg %p37
        $region76: #{afno2d_channelfirst.1} parent=73 // pred_check_branch
          %262 = sbr.rel (%p260) target = $region78
        $region77: #{afno2d_channelfirst.1} parent=73 // pred_region
          _
        $region78: #{afno2d_channelfirst.1} parent=73 // pred_fallthru
          _
        %s263 = sand.u32 %s24, 1
        %s264 = sand.u32 %s24, 1
        %s265 = smul.addr %s264, 64
        %s266 = scalar_lea.vmem [#allocation2], %s265
        %p267 = pneg %p37
        %p268 = pneg %p34
        %p269 = pneg %p58
        %p270 = pneg %p55
        %p271 = pneg %p79
        %p272 = pneg %p76
        %p273 = pneg %p100
        %p274 = pneg %p97
        %p275 = pneg %p121
        %p276 = pneg %p118
        %p277 = pneg %p147
        %p278 = pneg %p144
        %s279 = sand.u32 %s134, 1
        %s280 = sand.u32 %s134, 1
        %s281 = smul.addr %s280, 128
        %s282 = scalar_lea.vmem [#allocation3], %s281
        %s283 = smul.u32 2, %s16
        %s284 = smul.u32 2, %s16
        %v286 = vld [vmem:[%s259] sm:$0xff]
        %v287 = vld [vmem:[%s259 + $0x8] sm:$0xff]
        %v288 = vld [vmem:[%s259 + $0x10] sm:$0xff]
        %v289 = vld [vmem:[%s259 + $0x18] sm:$0xff]
        %v290 = vld [vmem:[%s259 + $0x20] sm:$0xff]
        %v291 = vld [vmem:[%s259 + $0x28] sm:$0xff]
        %v292 = vld [vmem:[%s259 + $0x30] sm:$0xff]
        %v293 = vld [vmem:[%s259 + $0x38] sm:$0xff]
        %v294 = vld [vmem:[%s1] sm:$0xf]
        %v295 = vld [vmem:[%s1 + $0x4] sm:$0xf]
        %v296 = vld [vmem:[%s1 + $0x8] sm:$0xf]
        %v297 = vld [vmem:[%s1 + $0xc] sm:$0xf]
        %v298 = vld [vmem:[%s1 + $0x10] sm:$0xf]
        %v299 = vld [vmem:[%s1 + $0x14] sm:$0xf]
        %v300 = vld [vmem:[%s1 + $0x18] sm:$0xf]
        %v301 = vld [vmem:[%s1 + $0x1c] sm:$0xf]
        %v302 = vld [vmem:[%s2] sm:$0xff]
        %v303 = vld [vmem:[%s2 + $0x8] sm:$0xff]
        %v304 = vld [vmem:[%s2 + $0x10] sm:$0xff]
        %v305 = vld [vmem:[%s2 + $0x18] sm:$0xff]
        %v306 = vld [vmem:[%s2 + $0x20] sm:$0xff]
        %v307 = vld [vmem:[%s2 + $0x28] sm:$0xff]
        %v308 = vld [vmem:[%s2 + $0x30] sm:$0xff]
        %v309 = vld [vmem:[%s2 + $0x38] sm:$0xff]
        %311 = vset.pattern.permute.xlu0 0
        %312 = vperm.xlu0 %311, %v302
        %v313 = vpop.permute.xlu0 %312
        %316 = vset.pattern.permute.xlu0 0
        %317 = vperm.xlu0 %316, %v303
        %v318 = vpop.permute.xlu0 %317
        %321 = vset.pattern.permute.xlu0 0
        %322 = vperm.xlu0 %321, %v304
        %v323 = vpop.permute.xlu0 %322
        %326 = vset.pattern.permute.xlu0 0
        %327 = vperm.xlu0 %326, %v305
        %v328 = vpop.permute.xlu0 %327
        %331 = vset.pattern.permute.xlu0 0
        %332 = vperm.xlu0 %331, %v306
        %v333 = vpop.permute.xlu0 %332
        %336 = vset.pattern.permute.xlu0 0
        %337 = vperm.xlu0 %336, %v307
        %v338 = vpop.permute.xlu0 %337
        %341 = vset.pattern.permute.xlu0 0
        %342 = vperm.xlu0 %341, %v308
        %v343 = vpop.permute.xlu0 %342
        %346 = vset.pattern.permute.xlu0 0
        %347 = vperm.xlu0 %346, %v309
        %v348 = vpop.permute.xlu0 %347
        %v358 = vunpack.c.l.b16 %v294
        %v359 = vunpack.c.l.b16 %v295
        %v360 = vunpack.c.l.b16 %v296
        %v361 = vunpack.c.l.b16 %v297
        %v362 = vunpack.c.l.b16 %v298
        %v363 = vunpack.c.l.b16 %v299
        %v364 = vunpack.c.l.b16 %v300
        %v365 = vunpack.c.l.b16 %v301
        %v366 = vpack.c.b16 %v359, %v358
        %v367 = vpack.c.b16 %v361, %v360
        %v368 = vpack.c.b16 %v363, %v362
        %v369 = vpack.c.b16 %v365, %v364
        %v378 = vunpack.c.l.b16 %v286
        %v379 = vunpack.c.h.b16 %v286
        %v380 = vunpack.c.l.b16 %v287
        %v381 = vunpack.c.h.b16 %v287
        %v382 = vunpack.c.l.b16 %v288
        %v383 = vunpack.c.h.b16 %v288
        %v384 = vunpack.c.l.b16 %v289
        %v385 = vunpack.c.h.b16 %v289
        %v386 = vunpack.c.l.b16 %v290
        %v387 = vunpack.c.h.b16 %v290
        %v388 = vunpack.c.l.b16 %v291
        %v389 = vunpack.c.h.b16 %v291
        %v390 = vunpack.c.l.b16 %v292
        %v391 = vunpack.c.h.b16 %v292
        %v392 = vunpack.c.l.b16 %v293
        %v393 = vunpack.c.h.b16 %v293
        %v394 = vpack.c.b16 %v380, %v378
        %v395 = vpack.c.b16 %v381, %v379
        %v396 = vpack.c.b16 %v384, %v382
        %v397 = vpack.c.b16 %v385, %v383
        %v398 = vpack.c.b16 %v388, %v386
        %v399 = vpack.c.b16 %v389, %v387
        %v400 = vpack.c.b16 %v392, %v390
        %v401 = vpack.c.b16 %v393, %v391
        %vm410 = vcmask 523264
        %v412 = vsel %vm410, %v366, 0
        %v415 = vsel %vm410, %v367, 0
        %v418 = vsel %vm410, %v368, 0
        %v421 = vsel %vm410, %v369, 0
        %423 = vmatpush.bf16.msra.mxu0 0
        %424 = vmatpush.bf16.msra.mxu0 0
        %425 = vmatpush.bf16.msra.mxu0 0
        %426 = vmatpush.bf16.msra.mxu0 0
        %427 = vmatpush.bf16.msra.mxu0 %v400
        %428 = vmatpush.bf16.msra.mxu0 %v398
        %429 = vmatpush.bf16.msra.mxu0 %v396
        %430 = vmatpush.bf16.msra.mxu0 %v394
        %431 = vmatmul.bf16.gmra.mxu0 %v412
        %v432 = vpop.f32.mrf.mxu0
        %v433 = vadd.f32 %v313, %v432
        %v434 = vpop.f32.mrf.mxu0
        %v435 = vadd.f32 %v318, %v434
        %436 = vmatmul.bf16.gmra.mxu0 %v415
        %v437 = vpop.f32.mrf.mxu0
        %v438 = vadd.f32 %v323, %v437
        %v439 = vpop.f32.mrf.mxu0
        %v440 = vadd.f32 %v328, %v439
        %441 = vmatmul.bf16.gmra.mxu0 %v418
        %v442 = vpop.f32.mrf.mxu0
        %v443 = vadd.f32 %v333, %v442
        %v444 = vpop.f32.mrf.mxu0
        %v445 = vadd.f32 %v338, %v444
        %446 = vmatmul.bf16.gmra.mxu0 %v421
        %v447 = vpop.f32.mrf.mxu0
        %v448 = vadd.f32 %v343, %v447
        %v449 = vpop.f32.mrf.mxu0
        %v450 = vadd.f32 %v348, %v449
        %451 = vdwg.mxu0
        %452 = vmatpush.bf16.msra.mxu0 0
        %453 = vmatpush.bf16.msra.mxu0 0
        %454 = vmatpush.bf16.msra.mxu0 0
        %455 = vmatpush.bf16.msra.mxu0 0
        %456 = vmatpush.bf16.msra.mxu0 %v401
        %457 = vmatpush.bf16.msra.mxu0 %v399
        %458 = vmatpush.bf16.msra.mxu0 %v397
        %459 = vmatpush.bf16.msra.mxu0 %v395
        %460 = vmatmul.bf16.gmra.mxu0 %v412
        %v461 = vpop.f32.mrf.mxu0
        %v462 = vadd.f32 %v313, %v461
        %v463 = vpop.f32.mrf.mxu0
        %v464 = vadd.f32 %v318, %v463
        %465 = vmatmul.bf16.gmra.mxu0 %v415
        %v466 = vpop.f32.mrf.mxu0
        %v467 = vadd.f32 %v323, %v466
        %v468 = vpop.f32.mrf.mxu0
        %v469 = vadd.f32 %v328, %v468
        %470 = vmatmul.bf16.gmra.mxu0 %v418
        %v471 = vpop.f32.mrf.mxu0
        %v472 = vadd.f32 %v333, %v471
        %v473 = vpop.f32.mrf.mxu0
        %v474 = vadd.f32 %v338, %v473
        %475 = vmatmul.bf16.gmra.mxu0 %v421
        %v476 = vpop.f32.mrf.mxu0
        %v477 = vadd.f32 %v343, %v476
        %v478 = vpop.f32.mrf.mxu0
        %v479 = vadd.f32 %v348, %v478
        %480 = vdwg.mxu0
        %v481 = vmax.f32 %v433, 0.0
        %v482 = vmax.f32 %v462, 0.0
        %v483 = vmax.f32 %v435, 0.0
        %v484 = vmax.f32 %v464, 0.0
        %v485 = vmax.f32 %v438, 0.0
        %v486 = vmax.f32 %v467, 0.0
        %v487 = vmax.f32 %v440, 0.0
        %v488 = vmax.f32 %v469, 0.0
        %v489 = vmax.f32 %v443, 0.0
        %v490 = vmax.f32 %v472, 0.0
        %v491 = vmax.f32 %v445, 0.0
        %v492 = vmax.f32 %v474, 0.0
        %v493 = vmax.f32 %v448, 0.0
        %v494 = vmax.f32 %v477, 0.0
        %v495 = vmax.f32 %v450, 0.0
        %v496 = vmax.f32 %v479, 0.0
        %v497 = vld [vmem:[%s3] sm:$0xf]
        %v498 = vld [vmem:[%s3 + $0x4] sm:$0xf]
        %v499 = vld [vmem:[%s3 + $0x8] sm:$0xf]
        %v500 = vld [vmem:[%s3 + $0xc] sm:$0xf]
        %v501 = vld [vmem:[%s3 + $0x10] sm:$0xf]
        %v502 = vld [vmem:[%s3 + $0x14] sm:$0xf]
        %v503 = vld [vmem:[%s3 + $0x18] sm:$0xf]
        %v504 = vld [vmem:[%s3 + $0x1c] sm:$0xf]
        %v505 = vpack.c.bf16 %v483, %v481
        %v506 = vpack.c.bf16 %v484, %v482
        %v507 = vpack.c.bf16 %v487, %v485
        %v508 = vpack.c.bf16 %v488, %v486
        %v509 = vpack.c.bf16 %v491, %v489
        %v510 = vpack.c.bf16 %v492, %v490
        %v511 = vpack.c.bf16 %v495, %v493
        %v512 = vpack.c.bf16 %v496, %v494
        %v513 = vld [vmem:[%s4] sm:$0xff]
        %v514 = vld [vmem:[%s4 + $0x8] sm:$0xff]
        %v515 = vld [vmem:[%s4 + $0x10] sm:$0xff]
        %v516 = vld [vmem:[%s4 + $0x18] sm:$0xff]
        %v517 = vld [vmem:[%s4 + $0x20] sm:$0xff]
        %v518 = vld [vmem:[%s4 + $0x28] sm:$0xff]
        %v519 = vld [vmem:[%s4 + $0x30] sm:$0xff]
        %v520 = vld [vmem:[%s4 + $0x38] sm:$0xff]
        %522 = vset.pattern.permute.xlu0 0
        %523 = vperm.xlu0 %522, %v513
        %v524 = vpop.permute.xlu0 %523
        %527 = vset.pattern.permute.xlu0 0
        %528 = vperm.xlu0 %527, %v514
        %v529 = vpop.permute.xlu0 %528
        %532 = vset.pattern.permute.xlu0 0
        %533 = vperm.xlu0 %532, %v515
        %v534 = vpop.permute.xlu0 %533
        %537 = vset.pattern.permute.xlu0 0
        %538 = vperm.xlu0 %537, %v516
        %v539 = vpop.permute.xlu0 %538
        %542 = vset.pattern.permute.xlu0 0
        %543 = vperm.xlu0 %542, %v517
        %v544 = vpop.permute.xlu0 %543
        %547 = vset.pattern.permute.xlu0 0
        %548 = vperm.xlu0 %547, %v518
        %v549 = vpop.permute.xlu0 %548
        %552 = vset.pattern.permute.xlu0 0
        %553 = vperm.xlu0 %552, %v519
        %v554 = vpop.permute.xlu0 %553
        %557 = vset.pattern.permute.xlu0 0
        %558 = vperm.xlu0 %557, %v520
        %v559 = vpop.permute.xlu0 %558
        %v569 = vunpack.c.l.b16 %v497
        %v570 = vunpack.c.l.b16 %v498
        %v571 = vunpack.c.l.b16 %v499
        %v572 = vunpack.c.l.b16 %v500
        %v573 = vunpack.c.l.b16 %v501
        %v574 = vunpack.c.l.b16 %v502
        %v575 = vunpack.c.l.b16 %v503
        %v576 = vunpack.c.l.b16 %v504
        %v577 = vpack.c.b16 %v570, %v569
        %v578 = vpack.c.b16 %v572, %v571
        %v579 = vpack.c.b16 %v574, %v573
        %v580 = vpack.c.b16 %v576, %v575
        %v582 = vsel %vm410, %v577, 0
        %v585 = vsel %vm410, %v578, 0
        %v588 = vsel %vm410, %v579, 0
        %v591 = vsel %vm410, %v580, 0
        %593 = vmatpush.bf16.msra.mxu0 0
        %594 = vmatpush.bf16.msra.mxu0 0
        %595 = vmatpush.bf16.msra.mxu0 0
        %596 = vmatpush.bf16.msra.mxu0 0
        %597 = vmatpush.bf16.msra.mxu0 %v511
        %598 = vmatpush.bf16.msra.mxu0 %v509
        %599 = vmatpush.bf16.msra.mxu0 %v507
        %600 = vmatpush.bf16.msra.mxu0 %v505
        %601 = vmatmul.bf16.gmra.mxu0 %v582
        %v602 = vpop.f32.mrf.mxu0
        %v603 = vadd.f32 %v524, %v602
        %v604 = vpop.f32.mrf.mxu0
        %v605 = vadd.f32 %v529, %v604
        %606 = vmatmul.bf16.gmra.mxu0 %v585
        %v607 = vpop.f32.mrf.mxu0
        %v608 = vadd.f32 %v534, %v607
        %v609 = vpop.f32.mrf.mxu0
        %v610 = vadd.f32 %v539, %v609
        %611 = vmatmul.bf16.gmra.mxu0 %v588
        %v612 = vpop.f32.mrf.mxu0
        %v613 = vadd.f32 %v544, %v612
        %v614 = vpop.f32.mrf.mxu0
        %v615 = vadd.f32 %v549, %v614
        %616 = vmatmul.bf16.gmra.mxu0 %v591
        %v617 = vpop.f32.mrf.mxu0
        %v618 = vadd.f32 %v554, %v617
        %v619 = vpop.f32.mrf.mxu0
        %v620 = vadd.f32 %v559, %v619
        %621 = vdwg.mxu0
        %622 = vmatpush.bf16.msra.mxu0 0
        %623 = vmatpush.bf16.msra.mxu0 0
        %624 = vmatpush.bf16.msra.mxu0 0
        %625 = vmatpush.bf16.msra.mxu0 0
        %626 = vmatpush.bf16.msra.mxu0 %v512
        %627 = vmatpush.bf16.msra.mxu0 %v510
        %628 = vmatpush.bf16.msra.mxu0 %v508
        %629 = vmatpush.bf16.msra.mxu0 %v506
        %630 = vmatmul.bf16.gmra.mxu0 %v582
        %v631 = vpop.f32.mrf.mxu0
        %v632 = vadd.f32 %v524, %v631
        %v633 = vpop.f32.mrf.mxu0
        %v634 = vadd.f32 %v529, %v633
        %635 = vmatmul.bf16.gmra.mxu0 %v585
        %v636 = vpop.f32.mrf.mxu0
        %v637 = vadd.f32 %v534, %v636
        %v638 = vpop.f32.mrf.mxu0
        %v639 = vadd.f32 %v539, %v638
        %640 = vmatmul.bf16.gmra.mxu0 %v588
        %v641 = vpop.f32.mrf.mxu0
        %v642 = vadd.f32 %v544, %v641
        %v643 = vpop.f32.mrf.mxu0
        %v644 = vadd.f32 %v549, %v643
        %645 = vmatmul.bf16.gmra.mxu0 %v591
        %v646 = vpop.f32.mrf.mxu0
        %v647 = vadd.f32 %v554, %v646
        %v648 = vpop.f32.mrf.mxu0
        %v649 = vadd.f32 %v559, %v648
        %650 = vdwg.mxu0
        %vm651 = vcmp.gt.f32.partialorder %v603, 0.01
        %vm652 = vcmp.gt.f32.partialorder %v632, 0.01
        %vm653 = vcmp.gt.f32.partialorder %v605, 0.01
        %vm654 = vcmp.gt.f32.partialorder %v634, 0.01
        %vm655 = vcmp.gt.f32.partialorder %v608, 0.01
        %vm656 = vcmp.gt.f32.partialorder %v637, 0.01
        %vm657 = vcmp.gt.f32.partialorder %v610, 0.01
        %vm658 = vcmp.gt.f32.partialorder %v639, 0.01
        %vm659 = vcmp.gt.f32.partialorder %v613, 0.01
        %vm660 = vcmp.gt.f32.partialorder %v642, 0.01
        %vm661 = vcmp.gt.f32.partialorder %v615, 0.01
        %vm662 = vcmp.gt.f32.partialorder %v644, 0.01
        %vm663 = vcmp.gt.f32.partialorder %v618, 0.01
        %vm664 = vcmp.gt.f32.partialorder %v647, 0.01
        %vm665 = vcmp.gt.f32.partialorder %v620, 0.01
        %vm666 = vcmp.gt.f32.partialorder %v649, 0.01
        %v667 = vsub.f32 %v603, 0.01
        %v668 = vsub.f32 %v632, 0.01
        %v669 = vsub.f32 %v605, 0.01
        %v670 = vsub.f32 %v634, 0.01
        %v671 = vsub.f32 %v608, 0.01
        %v672 = vsub.f32 %v637, 0.01
        %v673 = vsub.f32 %v610, 0.01
        %v674 = vsub.f32 %v639, 0.01
        %v675 = vsub.f32 %v613, 0.01
        %v676 = vsub.f32 %v642, 0.01
        %v677 = vsub.f32 %v615, 0.01
        %v678 = vsub.f32 %v644, 0.01
        %v679 = vsub.f32 %v618, 0.01
        %v680 = vsub.f32 %v647, 0.01
        %v681 = vsub.f32 %v620, 0.01
        %v682 = vsub.f32 %v649, 0.01
        %vm683 = vcmp.lt.f32.partialorder %v603, -0.01
        %vm684 = vcmp.lt.f32.partialorder %v632, -0.01
        %vm685 = vcmp.lt.f32.partialorder %v605, -0.01
        %vm686 = vcmp.lt.f32.partialorder %v634, -0.01
        %vm687 = vcmp.lt.f32.partialorder %v608, -0.01
        %vm688 = vcmp.lt.f32.partialorder %v637, -0.01
        %vm689 = vcmp.lt.f32.partialorder %v610, -0.01
        %vm690 = vcmp.lt.f32.partialorder %v639, -0.01
        %vm691 = vcmp.lt.f32.partialorder %v613, -0.01
        %vm692 = vcmp.lt.f32.partialorder %v642, -0.01
        %vm693 = vcmp.lt.f32.partialorder %v615, -0.01
        %vm694 = vcmp.lt.f32.partialorder %v644, -0.01
        %vm695 = vcmp.lt.f32.partialorder %v618, -0.01
        %vm696 = vcmp.lt.f32.partialorder %v647, -0.01
        %vm697 = vcmp.lt.f32.partialorder %v620, -0.01
        %vm698 = vcmp.lt.f32.partialorder %v649, -0.01
        %v699 = vadd.f32 %v603, 0.01
        %v700 = vadd.f32 %v632, 0.01
        %v701 = vadd.f32 %v605, 0.01
        %v702 = vadd.f32 %v634, 0.01
        %v703 = vadd.f32 %v608, 0.01
        %v704 = vadd.f32 %v637, 0.01
        %v705 = vadd.f32 %v610, 0.01
        %v706 = vadd.f32 %v639, 0.01
        %v707 = vadd.f32 %v613, 0.01
        %v708 = vadd.f32 %v642, 0.01
        %v709 = vadd.f32 %v615, 0.01
        %v710 = vadd.f32 %v644, 0.01
        %v711 = vadd.f32 %v618, 0.01
        %v712 = vadd.f32 %v647, 0.01
        %v713 = vadd.f32 %v620, 0.01
        %v714 = vadd.f32 %v649, 0.01
        %v715 = vsel %vm683, %v699, 0.0
        %v716 = vsel %vm684, %v700, 0.0
        %v717 = vsel %vm685, %v701, 0.0
        %v718 = vsel %vm686, %v702, 0.0
        %v719 = vsel %vm687, %v703, 0.0
        %v720 = vsel %vm688, %v704, 0.0
        %v721 = vsel %vm689, %v705, 0.0
        %v722 = vsel %vm690, %v706, 0.0
        %v723 = vsel %vm691, %v707, 0.0
        %v724 = vsel %vm692, %v708, 0.0
        %v725 = vsel %vm693, %v709, 0.0
        %v726 = vsel %vm694, %v710, 0.0
        %v727 = vsel %vm695, %v711, 0.0
        %v728 = vsel %vm696, %v712, 0.0
        %v729 = vsel %vm697, %v713, 0.0
        %v730 = vsel %vm698, %v714, 0.0
        %v731 = vsel %vm651, %v667, %v715
        %v732 = vsel %vm652, %v668, %v716
        %v733 = vsel %vm653, %v669, %v717
        %v734 = vsel %vm654, %v670, %v718
        %v735 = vsel %vm655, %v671, %v719
        %v736 = vsel %vm656, %v672, %v720
        %v737 = vsel %vm657, %v673, %v721
        %v738 = vsel %vm658, %v674, %v722
        %v739 = vsel %vm659, %v675, %v723
        %v740 = vsel %vm660, %v676, %v724
        %v741 = vsel %vm661, %v677, %v725
        %v742 = vsel %vm662, %v678, %v726
        %v743 = vsel %vm663, %v679, %v727
        %v744 = vsel %vm664, %v680, %v728
        %v745 = vsel %vm665, %v681, %v729
        %v746 = vsel %vm666, %v682, %v730
        %v747 = vunpack.c.l.bf16 %v286
        %v748 = vunpack.c.h.bf16 %v286
        %v749 = vunpack.c.l.bf16 %v287
        %v750 = vunpack.c.h.bf16 %v287
        %v751 = vunpack.c.l.bf16 %v288
        %v752 = vunpack.c.h.bf16 %v288
        %v753 = vunpack.c.l.bf16 %v289
        %v754 = vunpack.c.h.bf16 %v289
        %v755 = vunpack.c.l.bf16 %v290
        %v756 = vunpack.c.h.bf16 %v290
        %v757 = vunpack.c.l.bf16 %v291
        %v758 = vunpack.c.h.bf16 %v291
        %v759 = vunpack.c.l.bf16 %v292
        %v760 = vunpack.c.h.bf16 %v292
        %v761 = vunpack.c.l.bf16 %v293
        %v762 = vunpack.c.h.bf16 %v293
        %v763 = vmul.f32 %v731, %v747
        %v764 = vmul.f32 %v732, %v748
        %v765 = vmul.f32 %v733, %v749
        %v766 = vmul.f32 %v734, %v750
        %v767 = vmul.f32 %v735, %v751
        %v768 = vmul.f32 %v736, %v752
        %v769 = vmul.f32 %v737, %v753
        %v770 = vmul.f32 %v738, %v754
        %v771 = vmul.f32 %v739, %v755
        %v772 = vmul.f32 %v740, %v756
        %v773 = vmul.f32 %v741, %v757
        %v774 = vmul.f32 %v742, %v758
        %v775 = vmul.f32 %v743, %v759
        %v776 = vmul.f32 %v744, %v760
        %v777 = vmul.f32 %v745, %v761
        %v778 = vmul.f32 %v746, %v762
        %v779 = vsub.f32 %v763, %v771
        %v780 = vsub.f32 %v764, %v772
        %v781 = vsub.f32 %v765, %v773
        %v782 = vsub.f32 %v766, %v774
        %v783 = vsub.f32 %v767, %v775
        %v784 = vsub.f32 %v768, %v776
        %v785 = vsub.f32 %v769, %v777
        %v786 = vsub.f32 %v770, %v778
        %787 = vst [vmem:[%s282] sm:$0xff] %v779
        %788 = vst [vmem:[%s282 + $0x8] sm:$0xff] %v780
        %789 = vst [vmem:[%s282 + $0x10] sm:$0xff] %v781
        %790 = vst [vmem:[%s282 + $0x18] sm:$0xff] %v782
        %791 = vst [vmem:[%s282 + $0x20] sm:$0xff] %v783
        %792 = vst [vmem:[%s282 + $0x28] sm:$0xff] %v784
        %793 = vst [vmem:[%s282 + $0x30] sm:$0xff] %v785
        %794 = vst [vmem:[%s282 + $0x38] sm:$0xff] %v786
        %v795 = vmul.f32 %v731, %v755
        %v796 = vmul.f32 %v732, %v756
        %v797 = vmul.f32 %v733, %v757
        %v798 = vmul.f32 %v734, %v758
        %v799 = vmul.f32 %v735, %v759
        %v800 = vmul.f32 %v736, %v760
        %v801 = vmul.f32 %v737, %v761
        %v802 = vmul.f32 %v738, %v762
        %v803 = vmul.f32 %v739, %v747
        %v804 = vmul.f32 %v740, %v748
        %v805 = vmul.f32 %v741, %v749
        %v806 = vmul.f32 %v742, %v750
        %v807 = vmul.f32 %v743, %v751
        %v808 = vmul.f32 %v744, %v752
        %v809 = vmul.f32 %v745, %v753
        %v810 = vmul.f32 %v746, %v754
        %v811 = vadd.f32 %v795, %v803
        %v812 = vadd.f32 %v796, %v804
        %v813 = vadd.f32 %v797, %v805
        %v814 = vadd.f32 %v798, %v806
        %v815 = vadd.f32 %v799, %v807
        %v816 = vadd.f32 %v800, %v808
        %v817 = vadd.f32 %v801, %v809
        %v818 = vadd.f32 %v802, %v810
        %819 = vst [vmem:[%s282 + $0x40] sm:$0xff] %v811
        %820 = vst [vmem:[%s282 + $0x48] sm:$0xff] %v812
        %821 = vst [vmem:[%s282 + $0x50] sm:$0xff] %v813
        %822 = vst [vmem:[%s282 + $0x58] sm:$0xff] %v814
        %823 = vst [vmem:[%s282 + $0x60] sm:$0xff] %v815
        %824 = vst [vmem:[%s282 + $0x68] sm:$0xff] %v816
        %825 = vst [vmem:[%s282 + $0x70] sm:$0xff] %v817
        %826 = vst [vmem:[%s282 + $0x78] sm:$0xff] %v818
        %s827 = sand.u32 %s134, 1
        %s828 = sand.u32 %s134, 1
        %s829 = smul.addr %s828, 128
        %s830 = scalar_lea.vmem [#allocation3], %s829
        // Predicated region
        $region79: #{afno2d_channelfirst.1} parent=73 // pred_check
          %p831 = pneg %p144
        $region80: #{afno2d_channelfirst.1} parent=73 // pred_check_branch
          %833 = sbr.rel (%p831) target = $region82
        $region81: #{afno2d_channelfirst.1} parent=73 // pred_region
          %s834 = smul.u32 2, %s16
          %s835 = smul.addr %s834, 8
          %s836 = scalar_lea.vmem %s5, %s835
          // Predicated region
          $region83: #{afno2d_channelfirst.1} parent=81 // pred_check
            _
          $region84: #{afno2d_channelfirst.1} parent=81 // pred_check_branch
            %838 = sbr.rel (0) target = $region86
          $region85: #{afno2d_channelfirst.1} parent=81 // pred_region
            // Predicated region
            $region87: #{afno2d_channelfirst.1} parent=85 // pred_check
              _
            $region88: #{afno2d_channelfirst.1} parent=85 // pred_check_branch
              %840 = sbr.rel (0) target = $region90
            $region89: #{afno2d_channelfirst.1} parent=85 // pred_region
              loop: start=0, step=1, limit=1
              $region91: #{afno2d_channelfirst.1} parent=89 // loop_pre_header
                _
              $region92: #{afno2d_channelfirst.1} parent=89 // loop_header
                %s842 = sphi 0, %s846
                %p843 = scmp.ge.s32.totalorder %s842, 1
                %s847 = sphi %s830, %s830
                %s848 = sphi %s836, %s836
              $region93: #{afno2d_channelfirst.1} parent=89 // loop_header_branch
                %845 = sbr.rel (%p843) target = $region97
              $region94: #{afno2d_channelfirst.1} parent=89 // loop_body
                %v849 = vld [vmem:[%s847] sm:$0xff]
                %850 = vst [vmem:[%s848] sm:$0xff] %v849
                %v851 = vld [vmem:[%s847 + $0x8] sm:$0xff]
                %852 = vst [vmem:[%s848 + $0x8] sm:$0xff] %v851
                %v853 = vld [vmem:[%s847 + $0x10] sm:$0xff]
                %854 = vst [vmem:[%s848 + $0x20] sm:$0xff] %v853
                %v855 = vld [vmem:[%s847 + $0x18] sm:$0xff]
                %856 = vst [vmem:[%s848 + $0x28] sm:$0xff] %v855
                %v857 = vld [vmem:[%s847 + $0x20] sm:$0xff]
                %858 = vst [vmem:[%s848 + $0x40] sm:$0xff] %v857
                %v859 = vld [vmem:[%s847 + $0x28] sm:$0xff]
                %860 = vst [vmem:[%s848 + $0x48] sm:$0xff] %v859
                %v861 = vld [vmem:[%s847 + $0x30] sm:$0xff]
                %862 = vst [vmem:[%s848 + $0x60] sm:$0xff] %v861
                %v863 = vld [vmem:[%s847 + $0x38] sm:$0xff]
                %864 = vst [vmem:[%s848 + $0x68] sm:$0xff] %v863
                %v865 = vld [vmem:[%s847 + $0x40] sm:$0xff]
                %866 = vst [vmem:[%s848 + $0x80] sm:$0xff] %v865
                %v867 = vld [vmem:[%s847 + $0x48] sm:$0xff]
                %868 = vst [vmem:[%s848 + $0x88] sm:$0xff] %v867
                %v869 = vld [vmem:[%s847 + $0x50] sm:$0xff]
                %870 = vst [vmem:[%s848 + $0xa0] sm:$0xff] %v869
                %v871 = vld [vmem:[%s847 + $0x58] sm:$0xff]
                %872 = vst [vmem:[%s848 + $0xa8] sm:$0xff] %v871
                %v873 = vld [vmem:[%s847 + $0x60] sm:$0xff]
                %874 = vst [vmem:[%s848 + $0xc0] sm:$0xff] %v873
                %v875 = vld [vmem:[%s847 + $0x68] sm:$0xff]
                %876 = vst [vmem:[%s848 + $0xc8] sm:$0xff] %v875
                %v877 = vld [vmem:[%s847 + $0x70] sm:$0xff]
                %878 = vst [vmem:[%s848 + $0xe0] sm:$0xff] %v877
                %v879 = vld [vmem:[%s847 + $0x78] sm:$0xff]
                %880 = vst [vmem:[%s848 + $0xe8] sm:$0xff] %v879
              $region95: #{afno2d_channelfirst.1} parent=89 // loop_footer
                %s846 = sadd.s32 1, %s842
              $region96: #{afno2d_channelfirst.1} parent=89 // loop_footer_branch
                %841 = sbr.rel target = $region92
              $region97: #{afno2d_channelfirst.1} parent=89 // loop_exit
                _
            $region90: #{afno2d_channelfirst.1} parent=85 // pred_fallthru
              _
            // Predicated region
            $region98: #{afno2d_channelfirst.1} parent=85 // pred_check
              _
            $region99: #{afno2d_channelfirst.1} parent=85 // pred_check_branch
              %882 = sbr.rel target = $region101
            $region100: #{afno2d_channelfirst.1} parent=85 // pred_region
              _
            $region101: #{afno2d_channelfirst.1} parent=85 // pred_fallthru
              _
          $region86: #{afno2d_channelfirst.1} parent=81 // pred_fallthru
            _
          %883 = vnop
        $region82: #{afno2d_channelfirst.1} parent=73 // pred_fallthru
          _
      $region74: #{afno2d_channelfirst.1} parent=5 // pred_fallthru
        _
      %p884 = scmp.le.s32.totalorder 2, %s11
      // Predicated region
      $region102: #{afno2d_channelfirst.1} parent=5 // pred_check
        %p885 = pneg %p884
      $region103: #{afno2d_channelfirst.1} parent=5 // pred_check_branch
        %887 = sbr.rel (%p885) target = $region105
      $region104: #{afno2d_channelfirst.1} parent=5 // pred_region
        %s888 = ssub.s32 %s11, 2
        // Predicated region
        $region106: #{afno2d_channelfirst.1} parent=104 // pred_check
          %p889 = pneg %p150
        $region107: #{afno2d_channelfirst.1} parent=104 // pred_check_branch
          %891 = sbr.rel (%p889) target = $region109
        $region108: #{afno2d_channelfirst.1} parent=104 // pred_region
          %s892 = sand.u32 %s135, 1
          %s893 = sand.u32 %s135, 1
          %s894 = smul.addr %s893, 128
          %s895 = scalar_lea.vmem [#allocation3], %s894
        $region109: #{afno2d_channelfirst.1} parent=104 // pred_fallthru
          _
      $region105: #{afno2d_channelfirst.1} parent=5 // pred_fallthru
        _
    $region6: #{afno2d_channelfirst.1} parent=1 // loop_footer
      %s15 = sadd.s32 1, %s11
    $region7: #{afno2d_channelfirst.1} parent=1 // loop_footer_branch
      %10 = sbr.rel target = $region3
    $region8: #{afno2d_channelfirst.1} parent=1 // loop_exit
      _

// kernel: reverse.1
$region0: #{reverse.1}
  #allocation0 [shape = 's32[1]{0}', space=sflag, size = 0x4, scoped, tag = 'scoped memory for reverse.1']
  %s0 = inlined_call_operand.vmem [shape: f32[2,32,16,7], index: 0, kind: input, shape index: {}]
  %s1 = inlined_call_operand.vmem [shape: f32[2,32,16,7], index: 1, kind: output, shape index: {}]
  %s2 = scalar_lea.vmem %s0, 96
  %v3 = vld [vmem:[%s2] sm:$0xff]
  %4 = vst [vmem:[%s1] sm:$0xff] %v3
  %s5 = scalar_lea.vmem %s0, 208
  %v6 = vld [vmem:[%s5] sm:$0xff]
  %s7 = scalar_lea.vmem %s1, 112
  %8 = vst [vmem:[%s7] sm:$0xff] %v6
  %s9 = scalar_lea.vmem %s0, 80
  %v10 = vld [vmem:[%s9] sm:$0xff]
  %s11 = scalar_lea.vmem %s1, 16
  %12 = vst [vmem:[%s11] sm:$0xff] %v10
  %s13 = scalar_lea.vmem %s0, 192
  %v14 = vld [vmem:[%s13] sm:$0xff]
  %s15 = scalar_lea.vmem %s1, 128
  %16 = vst [vmem:[%s15] sm:$0xff] %v14
  %s17 = scalar_lea.vmem %s0, 64
  %v18 = vld [vmem:[%s17] sm:$0xff]
  %s19 = scalar_lea.vmem %s1, 32
  %20 = vst [vmem:[%s19] sm:$0xff] %v18
  %s21 = scalar_lea.vmem %s0, 176
  %v22 = vld [vmem:[%s21] sm:$0xff]
  %s23 = scalar_lea.vmem %s1, 144
  %24 = vst [vmem:[%s23] sm:$0xff] %v22
  %s25 = scalar_lea.vmem %s0, 48
  %v26 = vld [vmem:[%s25] sm:$0xff]
  %s27 = scalar_lea.vmem %s1, 48
  %28 = vst [vmem:[%s27] sm:$0xff] %v26
  %s29 = scalar_lea.vmem %s0, 160
  %v30 = vld [vmem:[%s29] sm:$0xff]
  %s31 = scalar_lea.vmem %s1, 160
  %32 = vst [vmem:[%s31] sm:$0xff] %v30
  %s33 = scalar_lea.vmem %s0, 32
  %v34 = vld [vmem:[%s33] sm:$0xff]
  %s35 = scalar_lea.vmem %s1, 64
  %36 = vst [vmem:[%s35] sm:$0xff] %v34
  %s37 = scalar_lea.vmem %s0, 144
  %v38 = vld [vmem:[%s37] sm:$0xff]
  %s39 = scalar_lea.vmem %s1, 176
  %40 = vst [vmem:[%s39] sm:$0xff] %v38
  %s41 = scalar_lea.vmem %s0, 16
  %v42 = vld [vmem:[%s41] sm:$0xff]
  %s43 = scalar_lea.vmem %s1, 80
  %44 = vst [vmem:[%s43] sm:$0xff] %v42
  %s45 = scalar_lea.vmem %s0, 128
  %v46 = vld [vmem:[%s45] sm:$0xff]
  %s47 = scalar_lea.vmem %s1, 192
  %48 = vst [vmem:[%s47] sm:$0xff] %v46
  %v49 = vld [vmem:[%s0] sm:$0xff]
  %s50 = scalar_lea.vmem %s1, 96
  %51 = vst [vmem:[%s50] sm:$0xff] %v49
  %s52 = scalar_lea.vmem %s0, 112
  %v53 = vld [vmem:[%s52] sm:$0xff]
  %s54 = scalar_lea.vmem %s1, 208
  %55 = vst [vmem:[%s54] sm:$0xff] %v53
  %s56 = scalar_lea.vmem %s0, 104
  %v57 = vld [vmem:[%s56] sm:$0xff]
  %s58 = scalar_lea.vmem %s1, 8
  %59 = vst [vmem:[%s58] sm:$0xff] %v57
  %s60 = scalar_lea.vmem %s0, 216
  %v61 = vld [vmem:[%s60] sm:$0xff]
  %s62 = scalar_lea.vmem %s1, 120
  %63 = vst [vmem:[%s62] sm:$0xff] %v61
  %s64 = scalar_lea.vmem %s0, 88
  %v65 = vld [vmem:[%s64] sm:$0xff]
  %s66 = scalar_lea.vmem %s1, 24
  %67 = vst [vmem:[%s66] sm:$0xff] %v65
  %s68 = scalar_lea.vmem %s0, 200
  %v69 = vld [vmem:[%s68] sm:$0xff]
  %s70 = scalar_lea.vmem %s1, 136
  %71 = vst [vmem:[%s70] sm:$0xff] %v69
  %s72 = scalar_lea.vmem %s0, 72
  %v73 = vld [vmem:[%s72] sm:$0xff]
  %s74 = scalar_lea.vmem %s1, 40
  %75 = vst [vmem:[%s74] sm:$0xff] %v73
  %s76 = scalar_lea.vmem %s0, 184
  %v77 = vld [vmem:[%s76] sm:$0xff]
  %s78 = scalar_lea.vmem %s1, 152
  %79 = vst [vmem:[%s78] sm:$0xff] %v77
  %s80 = scalar_lea.vmem %s0, 56
  %v81 = vld [vmem:[%s80] sm:$0xff]
  %s82 = scalar_lea.vmem %s1, 56
  %83 = vst [vmem:[%s82] sm:$0xff] %v81
  %s84 = scalar_lea.vmem %s0, 168
  %v85 = vld [vmem:[%s84] sm:$0xff]
  %s86 = scalar_lea.vmem %s1, 168
  %87 = vst [vmem:[%s86] sm:$0xff] %v85
  %s88 = scalar_lea.vmem %s0, 40
  %v89 = vld [vmem:[%s88] sm:$0xff]
  %s90 = scalar_lea.vmem %s1, 72
  %91 = vst [vmem:[%s90] sm:$0xff] %v89
  %s92 = scalar_lea.vmem %s0, 152
  %v93 = vld [vmem:[%s92] sm:$0xff]
  %s94 = scalar_lea.vmem %s1, 184
  %95 = vst [vmem:[%s94] sm:$0xff] %v93
  %s96 = scalar_lea.vmem %s0, 24
  %v97 = vld [vmem:[%s96] sm:$0xff]
  %s98 = scalar_lea.vmem %s1, 88
  %99 = vst [vmem:[%s98] sm:$0xff] %v97
  %s100 = scalar_lea.vmem %s0, 136
  %v101 = vld [vmem:[%s100] sm:$0xff]
  %s102 = scalar_lea.vmem %s1, 200
  %103 = vst [vmem:[%s102] sm:$0xff] %v101
  %s104 = scalar_lea.vmem %s0, 8
  %v105 = vld [vmem:[%s104] sm:$0xff]
  %s106 = scalar_lea.vmem %s1, 104
  %107 = vst [vmem:[%s106] sm:$0xff] %v105
  %s108 = scalar_lea.vmem %s0, 120
  %v109 = vld [vmem:[%s108] sm:$0xff]
  %s110 = scalar_lea.vmem %s1, 216
  %111 = vst [vmem:[%s110] sm:$0xff] %v109

</llo_original>
